<compile_context>
chip_gen: v7x
topology: tpu7x:2x2x1
jax: 0.10.0
libtpu: 0.0.40
codegen_flags: <defaults>
</compile_context>

<pallas_src>
import jax
import jax.numpy as jnp
from jax.experimental import pallas as pl
from jax.experimental.pallas import tpu as pltpu


def _loss_kernel(const_ref, output_ref, target_ref, out_ref):
    # const_ref: SMEM (1,) f32 holding (log_q - log_p)
    # output_ref: VMEM (TM, C) log-probs in native dtype
    # target_ref: VMEM (TM, 1) int32 class ids
    out = output_ref[...].astype(jnp.float32)                 # in-register cast (VPU)
    tgt = target_ref[...]                                     # (TM, 1) i32
    col = jax.lax.broadcasted_iota(jnp.int32, out.shape, 1)   # (TM, C) lane indices
    picked = jnp.where(col == tgt, out, jnp.float32(0.0))     # select target lane
    nll = -jnp.sum(picked, axis=1, keepdims=True)             # (TM, 1) XLU lane-reduce
    out_ref[...] = nll + const_ref[0]                         # broadcast scalar term


def _pick_row_tile(n, c, itemsize):
    """Rows per tile: keep one input buffer <= ~8 MiB so double-buffering fits
    comfortably inside v7x's 64 MiB VMEM (and trivially inside v5e/v6e's 128 MiB)."""
    budget_bytes = 8 * 1024 * 1024
    tm = budget_bytes // max(1, c * itemsize)
    tm = max(8, min(tm, 1024))
    tm = (tm // 8) * 8           # keep second-to-last dim a multiple of 8
    if tm >= n:
        return n                 # full-array dim satisfies the (8,128) rule
    return tm


def loss_forward(target, output, log_p, log_q):
    """target: (N,) int; output: (N, C) log-probs (f32 or bf16); log_p, log_q: scalars.

    Returns loss of shape (N,) float32, matching the PyTorch module's semantics.
    """
    N, C = output.shape
    target_col = target.astype(jnp.int32).reshape(N, 1)
    # Fold log_q - log_p into one scalar, carried in SMEM.
    const = (jnp.asarray(log_q, jnp.float32) - jnp.asarray(log_p, jnp.float32)).reshape(1)

    tm = _pick_row_tile(N, C, output.dtype.itemsize)
    grid = (pl.cdiv(N, tm),)

    out = pl.pallas_call(
        _loss_kernel,
        out_shape=jax.ShapeDtypeStruct((N, 1), jnp.float32),
        grid=grid,
        in_specs=[
            pl.BlockSpec(memory_space=pltpu.MemorySpace.SMEM),      # (log_q - log_p)
            pl.BlockSpec((tm, C), lambda i: (i, 0)),                # output log-probs
            pl.BlockSpec((tm, 1), lambda i: (i, 0)),                # target ids
        ],
        out_specs=pl.BlockSpec((tm, 1), lambda i: (i, 0)),
        compiler_params=pltpu.CompilerParams(
            dimension_semantics=("parallel",),                      # rows independent
            vmem_limit_bytes=48 * 1024 * 1024,                      # headroom under 64 MiB (v7x)
        ),
    )(const, output, target_col)
    # TODO(synk): for very small C a lane-dense (1, TM) output layout would avoid
    # masked vst.msk stores, but the write is a tiny fraction of traffic here.
    return out[:, 0]


def _reference(target, output, log_p, log_q):
    nll = -jnp.take_along_axis(
        output.astype(jnp.float32), target[:, None].astype(jnp.int32), axis=1
    )[:, 0]
    return log_q - log_p + nll


if __name__ == "__main__":
    N, C = 8, 32
    key = jax.random.PRNGKey(0)
    k1, k2, k3, k4 = jax.random.split(key, 4)

    logits = jax.random.normal(k1, (N, C), dtype=jnp.float32)
    output = jax.nn.log_softmax(logits, axis=-1)              # log-probabilities (NLL input)
    target = jax.random.randint(k2, (N,), 0, C, dtype=jnp.int32)
    log_p = jax.random.normal(k3, (), dtype=jnp.float32)      # scalar prior log-prob
    log_q = jax.random.normal(k4, (), dtype=jnp.float32)      # scalar variational log-prob

    loss = jax.block_until_ready(loss_forward(target, output, log_p, log_q))
    ref = _reference(target, output, log_p, log_q)

    assert loss.shape == (N,)
    assert jnp.allclose(loss, ref, atol=1e-5, rtol=1e-5), (loss, ref)
    print("KERNEL_OK")
</pallas_src>

<mosaic_0001>
module attributes {stable_mosaic.version = 11 : i64} {
  func.func @_loss_kernel(%arg0: i32, %arg1: memref<1xf32, #tpu.memory_space<smem>>, %arg2: memref<8x32xf32, #tpu.memory_space<vmem>>, %arg3: memref<8x1xi32, #tpu.memory_space<vmem>>, %arg4: memref<8x1xf32, #tpu.memory_space<vmem>>) attributes {dimension_semantics = [#tpu.dimension_semantics<parallel>], iteration_bounds = array<i64: 1>, scalar_prefetch = 0 : i64, scratch_operands = 0 : i64, tpu.core_type = #tpu.core_type<tc>, window_params = [{transform_indices = @transform_0, window_bounds = array<i64: 1>}, {transform_indices = @transform_1, window_bounds = array<i64: 8, 32>}, {transform_indices = @transform_2, window_bounds = array<i64: 8, 1>}, {transform_indices = @transform_3, window_bounds = array<i64: 8, 1>}]} {
    %c0 = arith.constant 0 : index
    %c0_0 = arith.constant 0 : index
    %0 = vector.load %arg2[%c0, %c0_0] : memref<8x32xf32, #tpu.memory_space<vmem>>, vector<8x32xf32>
    %c0_1 = arith.constant 0 : index
    %c0_2 = arith.constant 0 : index
    %1 = vector.load %arg3[%c0_1, %c0_2] : memref<8x1xi32, #tpu.memory_space<vmem>>, vector<8x1xi32>
    %2 = tpu.iota {dimensions = array<i32: 1>} : vector<8x32xi32>
    %3 = vector.broadcast %1 : vector<8x1xi32> to vector<8x32xi32>
    %4 = arith.cmpi eq, %2, %3 : vector<8x32xi32>
    %cst = arith.constant 0.000000e+00 : f32
    %5 = vector.broadcast %cst : f32 to vector<8x32xf32>
    %6 = arith.select %4, %0, %5 : vector<8x32xi1>, vector<8x32xf32>
    %cst_3 = arith.constant dense<0.000000e+00> : vector<8xf32>
    %7 = vector.multi_reduction <add>, %6, %cst_3 [1] : vector<8x32xf32> to vector<8xf32>
    %8 = vector.shape_cast %7 : vector<8xf32> to vector<8x1xf32>
    %cst_4 = arith.constant 0.000000e+00 : f32
    %9 = vector.broadcast %cst_4 : f32 to vector<8x1xf32>
    %10 = arith.subf %9, %8 : vector<8x1xf32>
    %c0_5 = arith.constant 0 : index
    %11 = memref.load %arg1[%c0_5] : memref<1xf32, #tpu.memory_space<smem>>
    %12 = vector.broadcast %11 : f32 to vector<8x1xf32>
    %13 = arith.addf %10, %12 : vector<8x1xf32>
    %c0_6 = arith.constant 0 : index
    %c0_7 = arith.constant 0 : index
    %14 = vector.load %arg4[%c0_6, %c0_7] : memref<8x1xf32, #tpu.memory_space<vmem>>, vector<8x1xf32>
    tpu.vector_store %arg4[%c0_6, %c0_7], %13 {strides = array<i32>} : memref<8x1xf32, #tpu.memory_space<vmem>>, vector<8x1xf32>,
    return
  }
  func.func @transform_0(%arg0: i32) -> i32 {
    %c0_i32 = arith.constant 0 : i32
    %c0_i32_0 = arith.constant 0 : i32
    return %c0_i32 : i32
  }
  func.func @transform_1(%arg0: i32) -> (i32, i32) {
    %c0_i32 = arith.constant 0 : i32
    %c0_i32_0 = arith.constant 0 : i32
    return %arg0, %c0_i32 : i32, i32
  }
  func.func @transform_2(%arg0: i32) -> (i32, i32) {
    %c0_i32 = arith.constant 0 : i32
    %c0_i32_0 = arith.constant 0 : i32
    return %arg0, %c0_i32 : i32, i32
  }
  func.func @transform_3(%arg0: i32) -> (i32, i32) {
    %c0_i32 = arith.constant 0 : i32
    %c0_i32_0 = arith.constant 0 : i32
    return %arg0, %c0_i32 : i32, i32
  }
}

</mosaic_0001>

<llo_original>
// kernel: tpu_custom_call.1
$region0: #{tpu_custom_call.1}
  #allocation0 [shape = 'u32[]', space=smem, size = 0x4, offset = 0x4, fixed_abs, tag = 'smem constant byte address 0x4 - core index']
  #allocation1 [shape = 'u32[144,128]{1,0:T(1,128)}', space=vmem, size = 0x12000, scoped, tag = 'internal scratch']
  #allocation2 [shape = 'f32[1]{0:T(128)S(6)}', space=smem, size = 0x200, scoped, tag = 'scoped memory for tpu_custom_call.1']
  %s0 = inlined_call_operand.<no memory space> [shape: f32[1], index: 0, kind: input, shape index: {}]
  %s1 = inlined_call_operand.vmem [shape: f32[8,32], index: 1, kind: input, shape index: {}]
  %s2 = inlined_call_operand.vmem [shape: s32[8,1], index: 2, kind: input, shape index: {}]
  %s3 = inlined_call_operand.vmem [shape: f32[8,1], index: 3, kind: output, shape index: {}]
  %s4 = sld [smem:[#allocation0]]
  $region22: #{tpu_custom_call.1} parent=0
    _
  %s6 = ssub.s32 1, %s4
  %s7 = scalar_select 0, %s6, %s4
  %8 = sst [smem:[#allocation2]] %s0
  // Predicated region
  $region2: #{tpu_custom_call.1} parent=0 // pred_check
    _
  $region3: #{tpu_custom_call.1} parent=0 // pred_check_branch
    %10 = sbr.rel (0) target = $region5
  $region4: #{tpu_custom_call.1} parent=0 // pred_region
    _
  $region5: #{tpu_custom_call.1} parent=0 // pred_fallthru
    _
  // Predicated region
  $region6: #{tpu_custom_call.1} parent=0 // pred_check
    _
  $region7: #{tpu_custom_call.1} parent=0 // pred_check_branch
    %12 = sbr.rel (0) target = $region9
  $region8: #{tpu_custom_call.1} parent=0 // pred_region
    _
  $region9: #{tpu_custom_call.1} parent=0 // pred_fallthru
    _
  // Predicated region
  $region10: #{tpu_custom_call.1} parent=0 // pred_check
    _
  $region11: #{tpu_custom_call.1} parent=0 // pred_check_branch
    %14 = sbr.rel (0) target = $region13
  $region12: #{tpu_custom_call.1} parent=0 // pred_region
    _
  $region13: #{tpu_custom_call.1} parent=0 // pred_fallthru
    _
  %v15 = vld [vmem:[%s1] sm:$0xff]
  %v16 = vld [vmem:[%s2] sm:$0xff]
  %v17 = vlaneseq
  %v18 = vand.u32 %v17, 127
  %19 = vset.pattern.permute.xlu0 0
  %20 = vperm.xlu0 %19, %v16
  %v21 = vpop.permute.xlu0 %20
  %vm22 = vcmp.eq.s32.totalorder %v18, %v21
  %v23 = vsel %vm22, %v15, 0.0
  %vm24 = vcmask 261120
  %v25 = vsel %vm24, %v23, 0.0
  %26 = vadd.xlane.f32.xlu0 %v25
  %v27 = vpop.xlane.xlu0 %26
  %v28 = vsub.f32 0.0, %v27
  %s29 = sld [smem:[#allocation2]]
  %v30 = vstv %s29
  %v31 = vadd.f32 %v28, %v30
  %vm32 = vcmask 7168
  %33 = vst.msk [vmem:[%s3] sm:$0xff] %vm32, %v31
  // Predicated region
  $region14: #{tpu_custom_call.1} parent=0 // pred_check
    _
  $region15: #{tpu_custom_call.1} parent=0 // pred_check_branch
    %35 = sbr.rel (0) target = $region17
  $region16: #{tpu_custom_call.1} parent=0 // pred_region
    _
  $region17: #{tpu_custom_call.1} parent=0 // pred_fallthru
    _
  // Predicated region
  $region18: #{tpu_custom_call.1} parent=0 // pred_check
    _
  $region19: #{tpu_custom_call.1} parent=0 // pred_check_branch
    %37 = sbr.rel (0) target = $region21
  $region20: #{tpu_custom_call.1} parent=0 // pred_region
    _
  $region21: #{tpu_custom_call.1} parent=0 // pred_fallthru
    _

</llo_original>
